<compile_context>
chip_gen: v7x
topology: tpu7x:2x2x1
jax: 0.10.0
libtpu: 0.0.40
codegen_flags: <defaults>
</compile_context>

<pallas_src>
import functools
import math

import jax
import jax.numpy as jnp
from jax.experimental import pallas as pl
from jax.experimental.pallas import tpu as pltpu

_LANE = 128
_SUBLANE = 8
_MAX_TILE_K = 512   # W1^T's K dim is pre-padded to a multiple of this at init
_MAX_TILE_N = 512


def _cdiv(a, b):
    return -(-a // b)


def _round_up(x, m):
    return _cdiv(x, m) * m


def _vmem_budget_bytes():
    """Generation-aware VMEM budget + scoped limit (v5e/v6e 128 MiB, v7x 64 MiB)."""
    cap = 64 * 1024 * 1024                      # conservative fallback (v7x)
    try:
        info = pltpu.get_tpu_info()
        cap_attr = getattr(info, "vmem_capacity_bytes", None)
        if cap_attr:
            cap = int(cap_attr)
    except Exception:
        pass
    budget = (cap * 3) // 4                     # headroom for compiler temps
    limit = min((cap * 17) // 20, cap - (4 << 20))
    return budget, limit


def _projector_kernel(x_ref, w1_ref, b1_ref, w2_ref, b2_ref, o_ref, acc_ref,
                      *, in_dim, tile_k, compute_dtype):
    # Grid = (row_tiles, out_tiles, k_tiles); K is the trailing reduction axis.
    #   x_ref:   (tile_n, tile_k)    f32   activation K-slice (cast on-chip)
    #   w1_ref:  (tile_k, hidden_p)  bf16  W1^T K-slice (pre-transposed, zero-padded)
    #   b1_ref:  (1, hidden_p)       f32
    #   w2_ref:  (hidden_p, tile_o)  bf16  W2^T out-slice (pre-transposed)
    #   b2_ref:  (1, tile_o)         f32
    #   o_ref:   (tile_n, tile_o)    f32   lane-dense (tile_o % 128 == 0)
    #   acc_ref: (tile_n, hidden_p)  f32   VMEM accumulator across K
    k = pl.program_id(2)

    @pl.when(k == 0)
    def _init():
        acc_ref[...] = jnp.zeros_like(acc_ref)

    # Activations arrive straight from the caller (no wrapper pad/cast HBM
    # round trip); cast to bf16 on-chip right before the MXU.
    x = x_ref[...]
    if in_dim % tile_k != 0:
        # Zero-mask the K tail of the partial last K tile: x is not padded in
        # HBM, so the out-of-range lanes of the edge block hold stale VMEM.
        col = jax.lax.broadcasted_iota(jnp.int32, x.shape, 1)
        x = jnp.where(k * tile_k + col < in_dim, x, 0.0)

    acc_ref[...] += jnp.dot(x.astype(compute_dtype), w1_ref[...],
                            preferred_element_type=jnp.float32)

    @pl.when(k == pl.num_programs(2) - 1)
    def _finalize():
        # Bias + ReLU in f32 on the VPU (correct for v5e, which has no bf16 VALU).
        h = jnp.maximum(acc_ref[...] + b1_ref[...], 0.0)
        # Second matmul: cast to bf16 for the MXU, accumulate in f32.
        y = jnp.dot(h.astype(w2_ref.dtype), w2_ref[...],
                    preferred_element_type=jnp.float32)
        o_ref[...] = (y + b2_ref[...]).astype(o_ref.dtype)


def prepare_projector_params(w1, b1, w2, b2, *, compute_dtype=jnp.bfloat16):
    """One-time (init-time) weight preprocessing.

    Transposes W1/W2, zero-pads feature dims to lane/tile multiples and casts
    the matmul operands to bf16 — done once so the forward hot path never pays
    for a weight transpose / re-materialization in HBM.
    """
    hidden, in_dim = w1.shape
    out_dim = w2.shape[0]

    in_k_p = _round_up(in_dim, _MAX_TILE_K)   # all K blocks fully in-bounds
    hidden_p = _round_up(hidden, _LANE)
    out_p = _round_up(out_dim, _LANE)

    w1t = jnp.pad(w1, ((0, hidden_p - hidden), (0, in_k_p - in_dim))
                  ).T.astype(compute_dtype)                   # (in_k_p, hidden_p)
    w2t = jnp.pad(w2, ((0, out_p - out_dim), (0, hidden_p - hidden))
                  ).T.astype(compute_dtype)                   # (hidden_p, out_p)
    b1p = jnp.pad(b1, (0, hidden_p - hidden)).reshape(1, hidden_p
                                                      ).astype(jnp.float32)
    b2p = jnp.pad(b2, (0, out_p - out_dim)).reshape(1, out_p
                                                    ).astype(jnp.float32)
    return {
        "w1t": w1t, "b1": b1p, "w2t": w2t, "b2": b2p,
        "in_dim": in_dim, "hidden": hidden, "hidden_p": hidden_p,
        "out_dim": out_dim, "out_p": out_p, "compute_dtype": compute_dtype,
    }


def projector_pallas(x2d, prepared):
    """x2d: (N, in_dim) f32. Returns (N, out_dim) f32."""
    n, in_dim = x2d.shape
    assert in_dim == prepared["in_dim"]

    compute_dtype = prepared["compute_dtype"]
    hidden = prepared["hidden"]
    hidden_p = prepared["hidden_p"]
    out_dim = prepared["out_dim"]
    out_p = prepared["out_p"]
    bpe = jnp.dtype(compute_dtype).itemsize

    budget, vmem_limit = _vmem_budget_bytes()

    # Row tile: balanced against n (bounds row-pad waste); when there is more
    # than one sublane's worth of rows, force >= 2 row tiles so the "parallel"
    # row axis can shard across v7x's two TensorCores.
    n_row_tiles = max(_cdiv(n, _MAX_TILE_N), min(2, _cdiv(n, _SUBLANE)))
    tile_n = _round_up(_cdiv(n, n_row_tiles), _SUBLANE)

    tile_k = min(_MAX_TILE_K, _round_up(in_dim, _LANE))
    tile_o = out_p

    def vmem_bytes(tn, tk, to):
        return (2 * tn * tk * 4              # x tile, f32, double-buffered
                + 2 * tk * hidden_p * bpe    # W1^T K-slice, double-buffered
                + 2 * hidden_p * 4           # b1
                + 2 * hidden_p * to * bpe    # W2^T out-slice
                + 2 * to * 4                 # b2
                + 2 * tn * to * 4            # output tile, f32, double-buffered
                + tn * hidden_p * 4          # f32 accumulator scratch
                + tn * hidden_p * bpe        # finalize transient: h cast to bf16
                + tn * to * 4)               # finalize transient: y (f32)

    # Shrink toward the budget.  Order: tile_k down to the 256 MXU-friendly
    # floor, then rows, then output-feature tiling (repeats the first matmul,
    # so last resort before dropping tile_k to 128 / rows to one sublane).
    while vmem_bytes(tile_n, tile_k, tile_o) > budget and tile_k > 256 and tile_k % 256 == 0:
        tile_k //= 2
    while vmem_bytes(tile_n, tile_k, tile_o) > budget and tile_n > 64:
        tile_n = _round_up(tile_n // 2, _SUBLANE)
    while vmem_bytes(tile_n, tile_k, tile_o) > budget and tile_o > _LANE:
        tile_o = _round_up(tile_o // 2, _LANE)
    while vmem_bytes(tile_n, tile_k, tile_o) > budget and tile_k > _LANE and tile_k % 256 == 0:
        tile_k //= 2
    while vmem_bytes(tile_n, tile_k, tile_o) > budget and tile_n > _SUBLANE:
        tile_n = _round_up(tile_n // 2, _SUBLANE)
    if vmem_bytes(tile_n, tile_k, tile_o) > budget:
        # TODO(synk): for extreme hidden dims the accumulator itself would need
        # hidden-tiling; not required for this module's projector shapes.
        raise ValueError(
            "projector_pallas: smallest tiles still exceed the VMEM budget "
            f"({vmem_bytes(tile_n, tile_k, tile_o)} > {budget} bytes)")

    grid = (_cdiv(n, tile_n), _cdiv(out_p, tile_o), _cdiv(in_dim, tile_k))

    kernel = functools.partial(_projector_kernel, in_dim=in_dim,
                               tile_k=tile_k, compute_dtype=compute_dtype)

    cost = pl.CostEstimate(
        flops=2 * n * (in_dim * hidden + hidden * out_dim),
        transcendentals=0,
        bytes_accessed=(n * in_dim * 4
                        + prepared["w1t"].size * bpe
                        + prepared["w2t"].size * bpe
                        + (hidden_p + out_p) * 4
                        + n * out_p * 4))

    out_padded = pl.pallas_call(
        kernel,
        out_shape=jax.ShapeDtypeStruct((n, out_p), jnp.float32),
        grid_spec=pltpu.PrefetchScalarGridSpec(
            num_scalar_prefetch=0,
            grid=grid,
            in_specs=[
                pl.BlockSpec((tile_n, tile_k), lambda i, j, k: (i, k)),
                pl.BlockSpec((tile_k, hidden_p), lambda i, j, k: (k, 0)),
                pl.BlockSpec((1, hidden_p), lambda i, j, k: (0, 0)),
                pl.BlockSpec((hidden_p, tile_o), lambda i, j, k: (0, j)),
                pl.BlockSpec((1, tile_o), lambda i, j, k: (0, j)),
            ],
            out_specs=pl.BlockSpec((tile_n, tile_o), lambda i, j, k: (i, j)),
            scratch_shapes=[pltpu.VMEM((tile_n, hidden_p), jnp.float32)],
        ),
        compiler_params=pltpu.CompilerParams(
            dimension_semantics=("parallel", "parallel", "arbitrary"),
            vmem_limit_bytes=vmem_limit,
        ),
        cost_estimate=cost,
    )(x2d.astype(jnp.float32), prepared["w1t"], prepared["b1"],
      prepared["w2t"], prepared["b2"])

    # Slice away the lane padding of the output features (layout plumbing only).
    return out_padded[:, :out_dim]


def model_add_projector_forward(x, prepared):
    """Full forward: view(A*B, ...) -> identity-flatten encoder -> projector."""
    shape = x.shape
    x = x.reshape(shape[0] * shape[1], *shape[2:])   # view(A*B, ...)
    x2d = x.reshape(x.shape[0], -1)                  # encoder: identity flatten
    return projector_pallas(x2d, prepared)


def init_linear_params(key, in_features, out_features):
    """Deterministic init mimicking nn.Linear default (uniform +-1/sqrt(fan_in))."""
    kw, kb = jax.random.split(key)
    bound = 1.0 / math.sqrt(in_features)
    w = jax.random.uniform(kw, (out_features, in_features), jnp.float32,
                           -bound, bound)
    b = jax.random.uniform(kb, (out_features,), jnp.float32, -bound, bound)
    return w, b


if __name__ == "__main__":
    # Small shapes consistent with the module's forward:
    #   x: (A=2 views, B=4 batch, 16, 16) -> N = 8, in_dim = 256
    #   projector: Linear(256, 128) -> ReLU -> Linear(128, 64)
    A, B, H, W = 2, 4, 16, 16
    in_dim, hidden_dim, out_dim = H * W, 128, 64

    key = jax.random.PRNGKey(0)
    kx, k1, k2 = jax.random.split(key, 3)
    x = jax.random.normal(kx, (A, B, H, W), jnp.float32)
    w1, b1 = init_linear_params(k1, in_dim, hidden_dim)
    w2, b2 = init_linear_params(k2, hidden_dim, out_dim)

    # One-time weight prep (transpose / pad / bf16 cast) — off the hot path.
    prepared = prepare_projector_params(w1, b1, w2, b2)

    out = model_add_projector_forward(x, prepared)
    out = jax.block_until_ready(out)
    assert out.shape == (A * B, out_dim)

    # Reference matching the kernel numerics (bf16 matmul operands, f32 accum).
    x2d = x.reshape(A * B, in_dim)
    xb = x2d.astype(jnp.bfloat16).astype(jnp.float32)
    w1b = w1.astype(jnp.bfloat16).astype(jnp.float32)
    w2b = w2.astype(jnp.bfloat16).astype(jnp.float32)
    h_ref = jnp.maximum(xb @ w1b.T + b1, 0.0)
    ref_bf = h_ref.astype(jnp.bfloat16).astype(jnp.float32) @ w2b.T + b2
    assert jnp.allclose(out, ref_bf, atol=2e-2, rtol=2e-2)

    # Coarse sanity check against the pure-f32 torch-equivalent math.
    ref_f32 = jnp.maximum(x2d @ w1.T + b1, 0.0) @ w2.T + b2
    assert jnp.allclose(out, ref_f32, atol=1e-1, rtol=1e-1)

    print("KERNEL_OK")
</pallas_src>

<mosaic_0001>
module attributes {stable_mosaic.version = 11 : i64} {
  func.func @_projector_kernel(%arg0: i32, %arg1: i32, %arg2: i32, %arg3: memref<8x256xf32, #tpu.memory_space<vmem>>, %arg4: memref<256x128xbf16, #tpu.memory_space<vmem>>, %arg5: memref<1x128xf32, #tpu.memory_space<vmem>>, %arg6: memref<128x128xbf16, #tpu.memory_space<vmem>>, %arg7: memref<1x128xf32, #tpu.memory_space<vmem>>, %arg8: memref<8x128xf32, #tpu.memory_space<vmem>>, %arg9: memref<8x128xf32, #tpu.memory_space<vmem>>) attributes {dimension_semantics = [#tpu.dimension_semantics<parallel>, #tpu.dimension_semantics<parallel>, #tpu.dimension_semantics<arbitrary>], iteration_bounds = array<i64: 1, 1, 1>, scalar_prefetch = 0 : i64, scratch_operands = 1 : i64, tpu.core_type = #tpu.core_type<tc>, window_params = [{transform_indices = @transform_0, window_bounds = array<i64: 8, 256>}, {transform_indices = @transform_1, window_bounds = array<i64: 256, 128>}, {pipeline_mode = #tpu.pipeline_mode<synchronous>, transform_indices = @transform_2, window_bounds = array<i64: 1, 128>}, {transform_indices = @transform_3, window_bounds = array<i64: 128, 128>}, {transform_indices = @transform_4, window_bounds = array<i64: 1, 128>}, {transform_indices = @transform_5, window_bounds = array<i64: 8, 128>}]} {
    %c0_i32 = arith.constant 0 : i32
    %0 = arith.cmpi eq, %arg2, %c0_i32 : i32
    %1 = arith.extui %0 : i1 to i32
    %c0_i32_0 = arith.constant 0 : i32
    %2 = arith.cmpi ne, %1, %c0_i32_0 : i32
    scf.if %2 {
      %cst_10 = arith.constant 0.000000e+00 : f32
      %13 = vector.broadcast %cst_10 : f32 to vector<8x128xf32>
      %c0_11 = arith.constant 0 : index
      %c0_12 = arith.constant 0 : index
      %14 = vector.load %arg9[%c0_11, %c0_12] : memref<8x128xf32, #tpu.memory_space<vmem>>, vector<8x128xf32>
      tpu.vector_store %arg9[%c0_11, %c0_12], %13 {strides = array<i32>} : memref<8x128xf32, #tpu.memory_space<vmem>>, vector<8x128xf32>,
    } else {
    }
    %c0 = arith.constant 0 : index
    %c0_1 = arith.constant 0 : index
    %3 = vector.load %arg3[%c0, %c0_1] : memref<8x256xf32, #tpu.memory_space<vmem>>, vector<8x256xf32>
    %c0_2 = arith.constant 0 : index
    %c0_3 = arith.constant 0 : index
    %4 = vector.load %arg9[%c0_2, %c0_3] : memref<8x128xf32, #tpu.memory_space<vmem>>, vector<8x128xf32>
    %5 = arith.truncf %3 : vector<8x256xf32> to vector<8x256xbf16>
    %c0_4 = arith.constant 0 : index
    %c0_5 = arith.constant 0 : index
    %6 = vector.load %arg4[%c0_4, %c0_5] : memref<256x128xbf16, #tpu.memory_space<vmem>>, vector<256x128xbf16>
    %cst = arith.constant dense<0.000000e+00> : vector<8x128xf32>
    %7 = tpu.matmul %5, %6, %cst {dimension_numbers = #tpu.dot_dimension_numbers<[1], [0], [0], [1], [0, 0, 1, 1], [], []>} : vector<8x256xbf16>, vector<256x128xbf16>, vector<8x128xf32> -> vector<8x128xf32>
    %8 = arith.addf %4, %7 : vector<8x128xf32>
    %c0_6 = arith.constant 0 : index
    %c0_7 = arith.constant 0 : index
    %9 = vector.load %arg9[%c0_6, %c0_7] : memref<8x128xf32, #tpu.memory_space<vmem>>, vector<8x128xf32>
    tpu.vector_store %arg9[%c0_6, %c0_7], %8 {strides = array<i32>} : memref<8x128xf32, #tpu.memory_space<vmem>>, vector<8x128xf32>,
    %c0_i32_8 = arith.constant 0 : i32
    %10 = arith.cmpi eq, %arg2, %c0_i32_8 : i32
    %11 = arith.extui %10 : i1 to i32
    %c0_i32_9 = arith.constant 0 : i32
    %12 = arith.cmpi ne, %11, %c0_i32_9 : i32
    scf.if %12 {
      %c0_10 = arith.constant 0 : index
      %c0_11 = arith.constant 0 : index
      %13 = vector.load %arg9[%c0_10, %c0_11] : memref<8x128xf32, #tpu.memory_space<vmem>>, vector<8x128xf32>
      %c0_12 = arith.constant 0 : index
      %c0_13 = arith.constant 0 : index
      %14 = vector.load %arg5[%c0_12, %c0_13] : memref<1x128xf32, #tpu.memory_space<vmem>>, vector<1x128xf32>
      %15 = vector.broadcast %14 : vector<1x128xf32> to vector<8x128xf32>
      %16 = arith.addf %13, %15 : vector<8x128xf32>
      %cst_14 = arith.constant 0.000000e+00 : f32
      %17 = vector.broadcast %cst_14 : f32 to vector<8x128xf32>
      %18 = arith.maximumf %16, %17 : vector<8x128xf32>
      %19 = arith.truncf %18 : vector<8x128xf32> to vector<8x128xbf16>
      %c0_15 = arith.constant 0 : index
      %c0_16 = arith.constant 0 : index
      %20 = vector.load %arg6[%c0_15, %c0_16] : memref<128x128xbf16, #tpu.memory_space<vmem>>, vector<128x128xbf16>
      %cst_17 = arith.constant dense<0.000000e+00> : vector<8x128xf32>
      %21 = tpu.matmul %19, %20, %cst_17 {dimension_numbers = #tpu.dot_dimension_numbers<[1], [0], [0], [1], [0, 0, 1, 1], [], []>} : vector<8x128xbf16>, vector<128x128xbf16>, vector<8x128xf32> -> vector<8x128xf32>
      %c0_18 = arith.constant 0 : index
      %c0_19 = arith.constant 0 : index
      %22 = vector.load %arg7[%c0_18, %c0_19] : memref<1x128xf32, #tpu.memory_space<vmem>>, vector<1x128xf32>
      %23 = vector.broadcast %22 : vector<1x128xf32> to vector<8x128xf32>
      %24 = arith.addf %21, %23 : vector<8x128xf32>
      %c0_20 = arith.constant 0 : index
      %c0_21 = arith.constant 0 : index
      %25 = vector.load %arg8[%c0_20, %c0_21] : memref<8x128xf32, #tpu.memory_space<vmem>>, vector<8x128xf32>
      tpu.vector_store %arg8[%c0_20, %c0_21], %24 {strides = array<i32>} : memref<8x128xf32, #tpu.memory_space<vmem>>, vector<8x128xf32>,
    } else {
    }
    return
  }
  func.func @transform_0(%arg0: i32, %arg1: i32, %arg2: i32) -> (i32, i32) {
    %c0_i32 = arith.constant 0 : i32
    return %arg0, %arg2 : i32, i32
  }
  func.func @transform_1(%arg0: i32, %arg1: i32, %arg2: i32) -> (i32, i32) {
    %c0_i32 = arith.constant 0 : i32
    %c0_i32_0 = arith.constant 0 : i32
    return %arg2, %c0_i32 : i32, i32
  }
  func.func @transform_2(%arg0: i32, %arg1: i32, %arg2: i32) -> (i32, i32) {
    %c0_i32 = arith.constant 0 : i32
    %c0_i32_0 = arith.constant 0 : i32
    %c0_i32_1 = arith.constant 0 : i32
    return %c0_i32, %c0_i32_0 : i32, i32
  }
  func.func @transform_3(%arg0: i32, %arg1: i32, %arg2: i32) -> (i32, i32) {
    %c0_i32 = arith.constant 0 : i32
    %c0_i32_0 = arith.constant 0 : i32
    return %c0_i32, %arg1 : i32, i32
  }
  func.func @transform_4(%arg0: i32, %arg1: i32, %arg2: i32) -> (i32, i32) {
    %c0_i32 = arith.constant 0 : i32
    %c0_i32_0 = arith.constant 0 : i32
    return %c0_i32, %arg1 : i32, i32
  }
  func.func @transform_5(%arg0: i32, %arg1: i32, %arg2: i32) -> (i32, i32) {
    %c0_i32 = arith.constant 0 : i32
    return %arg0, %arg1 : i32, i32
  }
}

</mosaic_0001>

<llo_original>
// kernel: tpu_custom_call.1
$region0: #{tpu_custom_call.1}
  #allocation0 [shape = 'u32[]', space=smem, size = 0x4, offset = 0x4, fixed_abs, tag = 'smem constant byte address 0x4 - core index']
  #allocation1 [shape = 'u32[144,128]{1,0:T(1,128)}', space=vmem, size = 0x12000, scoped, tag = 'internal scratch']
  #allocation2 [shape = 'f32[8,128]{1,0:T(8,128)}', space=vmem, size = 0x1000, scoped, tag = 'scratch operand']
  %s0 = inlined_call_operand.hbm [shape: f32[8,256], index: 0, kind: input, shape index: {}]
  %s1 = inlined_call_operand.hbm [shape: bf16[512,128], index: 1, kind: input, shape index: {}]
  %s2 = inlined_call_operand.vmem [shape: f32[1,128], index: 2, kind: input, shape index: {}]
  %s3 = inlined_call_operand.hbm [shape: bf16[128,128], index: 3, kind: input, shape index: {}]
  %s4 = inlined_call_operand.vmem [shape: f32[1,128], index: 4, kind: input, shape index: {}]
  %s5 = inlined_call_operand.hbm [shape: f32[8,128], index: 5, kind: output, shape index: {}]
  %s6 = sld [smem:[#allocation0]]
  $region50: #{tpu_custom_call.1} parent=0
    _
  %s8 = ssub.s32 1, %s6
  %s9 = scalar_select 0, %s8, %s6
  $region1: #{tpu_custom_call.1} parent=0
    #allocation3 [shape = 'u8[8192]{0}', space=vmem, size = 0x2000, scoped, tag = 'input window, operand 0, single buffered']
    #allocation4 [shape = 's32[1]{0}', space=sflag, size = 0x4, scoped, tag = 'scoped memory for tpu_custom_call.1']
    #allocation5 [shape = 's32[1]{0}', space=sflag, size = 0x4, scoped, tag = 'scoped memory for tpu_custom_call.1']
    #allocation6 [shape = 'u8[65536]{0}', space=vmem, size = 0x10000, scoped, tag = 'input window, operand 1, single buffered']
    #allocation7 [shape = 's32[1]{0}', space=sflag, size = 0x4, scoped, tag = 'scoped memory for tpu_custom_call.1']
    #allocation8 [shape = 'u8[32768]{0}', space=vmem, size = 0x8000, scoped, tag = 'input window, operand 3, single buffered']
    #allocation9 [shape = 'u8[4096]{0}', space=vmem, size = 0x1000, scoped, tag = 'output window, operand 0, single buffered']
    %10 = vsyncpa [#allocation4], 0
    %11 = vsyncpa [#allocation7], 0
    %12 = vsyncpa [#allocation5], 0
    // Predicated region
    $region2: #{tpu_custom_call.1} parent=1 // pred_check
      _
    $region3: #{tpu_custom_call.1} parent=1 // pred_check_branch
      %14 = sbr.rel (0) target = $region5
    $region4: #{tpu_custom_call.1} parent=1 // pred_region
      %s16 = ssub.s32 256, 256
      %17 = vsyncadd [#allocation4], %s16
      %s19 = sshll.u32 [#allocation3], 4
      %s20 = int_to_ptr.vmem [resolvable:$true] %s19
      %22 = dma.hbm_to_vmem [thread:$0]  %s0, 256, %s20, [#allocation4]
    $region5: #{tpu_custom_call.1} parent=1 // pred_fallthru
      _
    // Predicated region
    $region6: #{tpu_custom_call.1} parent=1 // pred_check
      _
    $region7: #{tpu_custom_call.1} parent=1 // pred_check_branch
      %24 = sbr.rel (0) target = $region9
    $region8: #{tpu_custom_call.1} parent=1 // pred_region
      %s26 = ssub.s32 2048, 2048
      %27 = vsyncadd [#allocation7], %s26
      %s28 = sshll.u32 [#allocation6], 4
      %s29 = int_to_ptr.vmem [resolvable:$true] %s28
      %34 = dma.hbm_to_vmem [thread:$0]  %s1, 2048, %s29, [#allocation7], 64, 64, 4
    $region9: #{tpu_custom_call.1} parent=1 // pred_fallthru
      _
    // Predicated region
    $region10: #{tpu_custom_call.1} parent=1 // pred_check
      _
    $region11: #{tpu_custom_call.1} parent=1 // pred_check_branch
      %36 = sbr.rel (0) target = $region13
    $region12: #{tpu_custom_call.1} parent=1 // pred_region
      _
    $region13: #{tpu_custom_call.1} parent=1 // pred_fallthru
      _
    // Predicated region
    $region14: #{tpu_custom_call.1} parent=1 // pred_check
      _
    $region15: #{tpu_custom_call.1} parent=1 // pred_check_branch
      %38 = sbr.rel (0) target = $region17
    $region16: #{tpu_custom_call.1} parent=1 // pred_region
      %s40 = ssub.s32 1024, 1024
      %41 = vsyncadd [#allocation7], %s40
      %s42 = sshll.u32 [#allocation8], 4
      %s43 = int_to_ptr.vmem [resolvable:$true] %s42
      %48 = dma.hbm_to_vmem [thread:$0]  %s3, 1024, %s43, [#allocation7], 64, 64, 4
    $region17: #{tpu_custom_call.1} parent=1 // pred_fallthru
      _
    // Predicated region
    $region18: #{tpu_custom_call.1} parent=1 // pred_check
      _
    $region19: #{tpu_custom_call.1} parent=1 // pred_check_branch
      %50 = sbr.rel (0) target = $region21
    $region20: #{tpu_custom_call.1} parent=1 // pred_region
      _
    $region21: #{tpu_custom_call.1} parent=1 // pred_fallthru
      _
    // Predicated region
    $region22: #{tpu_custom_call.1} parent=1 // pred_check
      _
    $region23: #{tpu_custom_call.1} parent=1 // pred_check_branch
      %52 = sbr.rel (0) target = $region25
    $region24: #{tpu_custom_call.1} parent=1 // pred_region
      %53 = dma.done [#allocation4], 256
    $region25: #{tpu_custom_call.1} parent=1 // pred_fallthru
      _
    // Predicated region
    $region26: #{tpu_custom_call.1} parent=1 // pred_check
      _
    $region27: #{tpu_custom_call.1} parent=1 // pred_check_branch
      %55 = sbr.rel (0) target = $region29
    $region28: #{tpu_custom_call.1} parent=1 // pred_region
      %56 = dma.done [#allocation7], 2048
    $region29: #{tpu_custom_call.1} parent=1 // pred_fallthru
      _
    // Predicated region
    $region30: #{tpu_custom_call.1} parent=1 // pred_check
      _
    $region31: #{tpu_custom_call.1} parent=1 // pred_check_branch
      %58 = sbr.rel (0) target = $region33
    $region32: #{tpu_custom_call.1} parent=1 // pred_region
      %59 = dma.done [#allocation7], 1024
    $region33: #{tpu_custom_call.1} parent=1 // pred_fallthru
      _
    %p61 = scmp.eq.s32.totalorder 0, 0
    // Predicated region
    $region34: #{tpu_custom_call.1} parent=1 // pred_check
      %p62 = pneg %p61
    $region35: #{tpu_custom_call.1} parent=1 // pred_check_branch
      %64 = sbr.rel (%p62) target = $region37
    $region36: #{tpu_custom_call.1} parent=1 // pred_region
      %65 = vst [vmem:[#allocation2] sm:$0xff] 0.0
    $region37: #{tpu_custom_call.1} parent=1 // pred_fallthru
      _
    %v66 = vld [vmem:[#allocation3] sm:$0xff]
    %v67 = vld [vmem:[#allocation3 + $0x8] sm:$0xff]
    %v68 = vld [vmem:[#allocation2] sm:$0xff]
    %v69 = vpack.c.bf16 %v66, %v66
    %v70 = vpack.c.bf16 %v67, %v67
    %v71 = vld [vmem:[#allocation6] sm:$0xf]
    %v72 = vld [vmem:[#allocation6 + $0x4] sm:$0xf]
    %v73 = vld [vmem:[#allocation6 + $0x8] sm:$0xf]
    %v74 = vld [vmem:[#allocation6 + $0xc] sm:$0xf]
    %v75 = vld [vmem:[#allocation6 + $0x10] sm:$0xf]
    %v76 = vld [vmem:[#allocation6 + $0x14] sm:$0xf]
    %v77 = vld [vmem:[#allocation6 + $0x18] sm:$0xf]
    %v78 = vld [vmem:[#allocation6 + $0x1c] sm:$0xf]
    %v79 = vld [vmem:[#allocation6 + $0x20] sm:$0xf]
    %v80 = vld [vmem:[#allocation6 + $0x24] sm:$0xf]
    %v81 = vld [vmem:[#allocation6 + $0x28] sm:$0xf]
    %v82 = vld [vmem:[#allocation6 + $0x2c] sm:$0xf]
    %v83 = vld [vmem:[#allocation6 + $0x30] sm:$0xf]
    %v84 = vld [vmem:[#allocation6 + $0x34] sm:$0xf]
    %v85 = vld [vmem:[#allocation6 + $0x38] sm:$0xf]
    %v86 = vld [vmem:[#allocation6 + $0x3c] sm:$0xf]
    %v87 = vld [vmem:[#allocation6 + $0x40] sm:$0xf]
    %v88 = vld [vmem:[#allocation6 + $0x44] sm:$0xf]
    %v89 = vld [vmem:[#allocation6 + $0x48] sm:$0xf]
    %v90 = vld [vmem:[#allocation6 + $0x4c] sm:$0xf]
    %v91 = vld [vmem:[#allocation6 + $0x50] sm:$0xf]
    %v92 = vld [vmem:[#allocation6 + $0x54] sm:$0xf]
    %v93 = vld [vmem:[#allocation6 + $0x58] sm:$0xf]
    %v94 = vld [vmem:[#allocation6 + $0x5c] sm:$0xf]
    %v95 = vld [vmem:[#allocation6 + $0x60] sm:$0xf]
    %v96 = vld [vmem:[#allocation6 + $0x64] sm:$0xf]
    %v97 = vld [vmem:[#allocation6 + $0x68] sm:$0xf]
    %v98 = vld [vmem:[#allocation6 + $0x6c] sm:$0xf]
    %v99 = vld [vmem:[#allocation6 + $0x70] sm:$0xf]
    %v100 = vld [vmem:[#allocation6 + $0x74] sm:$0xf]
    %v101 = vld [vmem:[#allocation6 + $0x78] sm:$0xf]
    %v102 = vld [vmem:[#allocation6 + $0x7c] sm:$0xf]
    %v135 = vunpack.c.l.b16 %v71
    %v136 = vunpack.c.l.b16 %v72
    %v137 = vunpack.c.l.b16 %v73
    %v138 = vunpack.c.l.b16 %v74
    %v139 = vunpack.c.l.b16 %v75
    %v140 = vunpack.c.l.b16 %v76
    %v141 = vunpack.c.l.b16 %v77
    %v142 = vunpack.c.l.b16 %v78
    %v143 = vunpack.c.l.b16 %v79
    %v144 = vunpack.c.l.b16 %v80
    %v145 = vunpack.c.l.b16 %v81
    %v146 = vunpack.c.l.b16 %v82
    %v147 = vunpack.c.l.b16 %v83
    %v148 = vunpack.c.l.b16 %v84
    %v149 = vunpack.c.l.b16 %v85
    %v150 = vunpack.c.l.b16 %v86
    %v151 = vunpack.c.l.b16 %v87
    %v152 = vunpack.c.l.b16 %v88
    %v153 = vunpack.c.l.b16 %v89
    %v154 = vunpack.c.l.b16 %v90
    %v155 = vunpack.c.l.b16 %v91
    %v156 = vunpack.c.l.b16 %v92
    %v157 = vunpack.c.l.b16 %v93
    %v158 = vunpack.c.l.b16 %v94
    %v159 = vunpack.c.l.b16 %v95
    %v160 = vunpack.c.l.b16 %v96
    %v161 = vunpack.c.l.b16 %v97
    %v162 = vunpack.c.l.b16 %v98
    %v163 = vunpack.c.l.b16 %v99
    %v164 = vunpack.c.l.b16 %v100
    %v165 = vunpack.c.l.b16 %v101
    %v166 = vunpack.c.l.b16 %v102
    %v167 = vpack.c.b16 %v136, %v135
    %v168 = vpack.c.b16 %v138, %v137
    %v169 = vpack.c.b16 %v140, %v139
    %v170 = vpack.c.b16 %v142, %v141
    %v171 = vpack.c.b16 %v144, %v143
    %v172 = vpack.c.b16 %v146, %v145
    %v173 = vpack.c.b16 %v148, %v147
    %v174 = vpack.c.b16 %v150, %v149
    %v175 = vpack.c.b16 %v152, %v151
    %v176 = vpack.c.b16 %v154, %v153
    %v177 = vpack.c.b16 %v156, %v155
    %v178 = vpack.c.b16 %v158, %v157
    %v179 = vpack.c.b16 %v160, %v159
    %v180 = vpack.c.b16 %v162, %v161
    %v181 = vpack.c.b16 %v164, %v163
    %v182 = vpack.c.b16 %v166, %v165
    %199 = vmatprep.subr.bf16.mxu0 0
    %200 = vmatpush1.bf16.msra.mxu0 %v167
    %201 = vmatprep.subr.bf16.mxu0 0
    %202 = vmatpush1.bf16.msra.mxu0 %v168
    %203 = vmatprep.subr.bf16.mxu0 0
    %204 = vmatpush1.bf16.msra.mxu0 %v169
    %205 = vmatprep.subr.bf16.mxu0 0
    %206 = vmatpush1.bf16.msra.mxu0 %v170
    %207 = vmatprep.subr.bf16.mxu0 0
    %208 = vmatpush1.bf16.msra.mxu0 %v171
    %209 = vmatprep.subr.bf16.mxu0 0
    %210 = vmatpush1.bf16.msra.mxu0 %v172
    %211 = vmatprep.subr.bf16.mxu0 0
    %212 = vmatpush1.bf16.msra.mxu0 %v173
    %213 = vmatprep.subr.bf16.mxu0 0
    %214 = vmatpush1.bf16.msra.mxu0 %v174
    %215 = vmatprep.subr.bf16.mxu0 0
    %216 = vmatpush1.bf16.msra.mxu0 %v175
    %217 = vmatprep.subr.bf16.mxu0 0
    %218 = vmatpush1.bf16.msra.mxu0 %v176
    %219 = vmatprep.subr.bf16.mxu0 0
    %220 = vmatpush1.bf16.msra.mxu0 %v177
    %221 = vmatprep.subr.bf16.mxu0 0
    %222 = vmatpush1.bf16.msra.mxu0 %v178
    %223 = vmatprep.subr.bf16.mxu0 0
    %224 = vmatpush1.bf16.msra.mxu0 %v179
    %225 = vmatprep.subr.bf16.mxu0 0
    %226 = vmatpush1.bf16.msra.mxu0 %v180
    %227 = vmatprep.subr.bf16.mxu0 0
    %228 = vmatpush1.bf16.msra.mxu0 %v181
    %229 = vmatprep.subr.bf16.mxu0 0
    %230 = vmatpush1.bf16.msra.mxu0 %v182
    %231 = vmatprep.mubr.bf16.mxu0 %v70
    %232 = vmatmul.mubr.bf16.gmra.mrb[0].mxu0 %v69
    %v233 = vpop.f32.mrb[0].mxu0
    %v234 = vadd.f32 0.0, %v233
    %v235 = vpop.f32.mrb[0].mxu0
    %v236 = vpop.f32.mrb[0].mxu0
    %v237 = vpop.f32.mrb[0].mxu0
    %238 = vdwg.mxu0
    %v239 = vadd.f32 %v68, %v234
    %240 = vst [vmem:[#allocation2] sm:$0xff] %v239
    // Predicated region
    $region38: #{tpu_custom_call.1} parent=1 // pred_check
      %p241 = pneg %p61
    $region39: #{tpu_custom_call.1} parent=1 // pred_check_branch
      %243 = sbr.rel (%p241) target = $region41
    $region40: #{tpu_custom_call.1} parent=1 // pred_region
      %v244 = vld [vmem:[#allocation2] sm:$0xff]
      %v245 = vld [vmem:[%s2] sm:$0x1]
      %v247 = vlaneseq
      %v248 = vshrl.u32 %v247, 7
      %v249 = vsub.s32 0, %v248
      %v250 = vrot.slane %v245, %v249
      %v252 = vadd.f32 %v244, %v250
      %v253 = vmax.f32 %v252, 0.0
      %v254 = vpack.c.bf16 %v253, %v253
      %v255 = vld [vmem:[#allocation8] sm:$0xf]
      %v256 = vld [vmem:[#allocation8 + $0x4] sm:$0xf]
      %v257 = vld [vmem:[#allocation8 + $0x8] sm:$0xf]
      %v258 = vld [vmem:[#allocation8 + $0xc] sm:$0xf]
      %v259 = vld [vmem:[#allocation8 + $0x10] sm:$0xf]
      %v260 = vld [vmem:[#allocation8 + $0x14] sm:$0xf]
      %v261 = vld [vmem:[#allocation8 + $0x18] sm:$0xf]
      %v262 = vld [vmem:[#allocation8 + $0x1c] sm:$0xf]
      %v263 = vld [vmem:[#allocation8 + $0x20] sm:$0xf]
      %v264 = vld [vmem:[#allocation8 + $0x24] sm:$0xf]
      %v265 = vld [vmem:[#allocation8 + $0x28] sm:$0xf]
      %v266 = vld [vmem:[#allocation8 + $0x2c] sm:$0xf]
      %v267 = vld [vmem:[#allocation8 + $0x30] sm:$0xf]
      %v268 = vld [vmem:[#allocation8 + $0x34] sm:$0xf]
      %v269 = vld [vmem:[#allocation8 + $0x38] sm:$0xf]
      %v270 = vld [vmem:[#allocation8 + $0x3c] sm:$0xf]
      %v271 = vld [vmem:[%s4] sm:$0x1]
      %v273 = vlaneseq
      %v274 = vshrl.u32 %v273, 7
      %v275 = vsub.s32 0, %v274
      %v276 = vrot.slane %v271, %v275
      %v294 = vunpack.c.l.b16 %v255
      %v295 = vunpack.c.l.b16 %v256
      %v296 = vunpack.c.l.b16 %v257
      %v297 = vunpack.c.l.b16 %v258
      %v298 = vunpack.c.l.b16 %v259
      %v299 = vunpack.c.l.b16 %v260
      %v300 = vunpack.c.l.b16 %v261
      %v301 = vunpack.c.l.b16 %v262
      %v302 = vunpack.c.l.b16 %v263
      %v303 = vunpack.c.l.b16 %v264
      %v304 = vunpack.c.l.b16 %v265
      %v305 = vunpack.c.l.b16 %v266
      %v306 = vunpack.c.l.b16 %v267
      %v307 = vunpack.c.l.b16 %v268
      %v308 = vunpack.c.l.b16 %v269
      %v309 = vunpack.c.l.b16 %v270
      %v310 = vpack.c.b16 %v295, %v294
      %v311 = vpack.c.b16 %v297, %v296
      %v312 = vpack.c.b16 %v299, %v298
      %v313 = vpack.c.b16 %v301, %v300
      %v314 = vpack.c.b16 %v303, %v302
      %v315 = vpack.c.b16 %v305, %v304
      %v316 = vpack.c.b16 %v307, %v306
      %v317 = vpack.c.b16 %v309, %v308
      %326 = vmatprep.subr.bf16.mxu0 0
      %327 = vmatpush1.bf16.msra.mxu0 %v310
      %328 = vmatprep.subr.bf16.mxu0 0
      %329 = vmatpush1.bf16.msra.mxu0 %v311
      %330 = vmatprep.subr.bf16.mxu0 0
      %331 = vmatpush1.bf16.msra.mxu0 %v312
      %332 = vmatprep.subr.bf16.mxu0 0
      %333 = vmatpush1.bf16.msra.mxu0 %v313
      %334 = vmatprep.subr.bf16.mxu0 0
      %335 = vmatpush1.bf16.msra.mxu0 %v314
      %336 = vmatprep.subr.bf16.mxu0 0
      %337 = vmatpush1.bf16.msra.mxu0 %v315
      %338 = vmatprep.subr.bf16.mxu0 0
      %339 = vmatpush1.bf16.msra.mxu0 %v316
      %340 = vmatprep.subr.bf16.mxu0 0
      %341 = vmatpush1.bf16.msra.mxu0 %v317
      %342 = vmatprep.subr.bf16.mxu0 0
      %343 = vmatpush1.bf16.msra.mxu0 0
      %344 = vmatprep.subr.bf16.mxu0 0
      %345 = vmatpush1.bf16.msra.mxu0 0
      %346 = vmatprep.subr.bf16.mxu0 0
      %347 = vmatpush1.bf16.msra.mxu0 0
      %348 = vmatprep.subr.bf16.mxu0 0
      %349 = vmatpush1.bf16.msra.mxu0 0
      %350 = vmatprep.subr.bf16.mxu0 0
      %351 = vmatpush1.bf16.msra.mxu0 0
      %352 = vmatprep.subr.bf16.mxu0 0
      %353 = vmatpush1.bf16.msra.mxu0 0
      %354 = vmatprep.subr.bf16.mxu0 0
      %355 = vmatpush1.bf16.msra.mxu0 0
      %356 = vmatprep.subr.bf16.mxu0 0
      %357 = vmatpush1.bf16.msra.mxu0 0
      %358 = vmatprep.mubr.bf16.mxu0 0
      %359 = vmatmul.mubr.bf16.gmra.mrb[0].mxu0 %v254
      %v360 = vpop.f32.mrb[0].mxu0
      %v361 = vadd.f32 %v276, %v360
      %v362 = vpop.f32.mrb[0].mxu0
      %v363 = vpop.f32.mrb[0].mxu0
      %v364 = vpop.f32.mrb[0].mxu0
      %365 = vdwg.mxu0
      %366 = vst [vmem:[#allocation9] sm:$0xff] %v361
    $region41: #{tpu_custom_call.1} parent=1 // pred_fallthru
      _
    // Predicated region
    $region42: #{tpu_custom_call.1} parent=1 // pred_check
      _
    $region43: #{tpu_custom_call.1} parent=1 // pred_check_branch
      %368 = sbr.rel (0) target = $region45
    $region44: #{tpu_custom_call.1} parent=1 // pred_region
      %s370 = ssub.s32 128, 128
      %371 = vsyncadd [#allocation5], %s370
      %s373 = sshll.u32 [#allocation9], 4
      %s374 = int_to_ptr.vmem [resolvable:$true] %s373
      %376 = dma.vmem_to_hbm [thread:$0]  %s374, 128, %s5, [#allocation5]
    $region45: #{tpu_custom_call.1} parent=1 // pred_fallthru
      _
    // Predicated region
    $region46: #{tpu_custom_call.1} parent=1 // pred_check
      _
    $region47: #{tpu_custom_call.1} parent=1 // pred_check_branch
      %378 = sbr.rel (0) target = $region49
    $region48: #{tpu_custom_call.1} parent=1 // pred_region
      %379 = dma.done [#allocation5], 128
    $region49: #{tpu_custom_call.1} parent=1 // pred_fallthru
      _
    %380 = vsyncpa [#allocation4], 1
    %381 = vsyncpa [#allocation7], 1
    %382 = vsyncpa [#allocation5], 1

</llo_original>
